<compile_context>
chip_gen: v7x
topology: tpu7x:2x2x1
jax: 0.10.0
libtpu: 0.0.40
codegen_flags: <defaults>
</compile_context>

<pallas_src>
import jax
import jax.numpy as jnp
from jax.experimental import pallas as pl
from jax.experimental.pallas import tpu as pltpu


def _score_kernel(sw_ref, ht_ref, o_ref):
    # sw_ref: [1, D]        loop-invariant transformed summary (f32)
    # ht_ref: [D, tile_n]   streamed lane-dense tile of h^T
    # o_ref : [1, tile_n]   lane-dense row of scores for this tile
    # scores[0, n] = sum_d sw[0, d] * hT[d, n]  -> natural MXU matmul, no XLU.
    o_ref[...] = jnp.dot(
        sw_ref[...], ht_ref[...], preferred_element_type=jnp.float32
    ).astype(o_ref.dtype)


def _round_up(x, m):
    return ((x + m - 1) // m) * m


def discriminator_forward(h, summary, weight, nodes=None, *, tile_n=None):
    """scores[n] = sum_j h[n, j] * (summary @ weight)[j]  (DGI discriminator)."""
    if nodes is not None:
        # TODO(synk): for large D (>= ~512) an in-kernel DMA gather driven by
        # scalar-prefetched indices would avoid materializing h[nodes] in HBM;
        # for small D the plain XLA gather is the right call.
        h = jnp.take(h, nodes, axis=0)

    n, d = h.shape
    itemsize = jnp.dtype(h.dtype).itemsize

    # --- 1) sw = summary @ W: tiny matvec, plain XLA, kept in f32 -------------
    sw = jnp.dot(summary.astype(jnp.float32), weight.astype(jnp.float32))
    sw = jnp.reshape(sw, (1, d))

    # --- 2) stream h^T in lane-dense (D, tile_n) blocks -----------------------
    n_128 = _round_up(n, 128)
    bytes_per_col = _round_up(d, 8) * itemsize           # sublane-padded column
    if tile_n is None:
        target_bytes = 4 * 1024 * 1024                    # ~4 MiB per block
        tile_n = target_bytes // max(bytes_per_col, 1)
        tile_n = max(256, min(32768, tile_n))
        if n_128 >= 2 * 128:
            # keep >= 2 tiles so both v7x TensorCores get work
            tile_n = min(tile_n, _round_up((n_128 + 1) // 2, 128))
    # lane-dense inputs & unmasked output stores require a multiple of 128
    tile_n = max(128, _round_up(min(int(tile_n), n_128), 128))

    n_pad = _round_up(n, tile_n)
    h_t = h.T                                             # [D, N]
    if n_pad != n:
        h_t = jnp.pad(h_t, ((0, 0), (0, n_pad - n)))      # zero rows -> zero score
    n_tiles = n_pad // tile_n

    # VMEM: double-buffered h^T blocks dominate; cap at 48 MiB (v7x headroom).
    block_bytes = bytes_per_col * tile_n
    vmem_limit = int(min(max(4 * block_bytes + (1 << 20), 32 * 1024 * 1024),
                         48 * 1024 * 1024))

    out = pl.pallas_call(
        _score_kernel,
        out_shape=jax.ShapeDtypeStruct((1, n_pad), jnp.float32),
        grid_spec=pltpu.PrefetchScalarGridSpec(
            num_scalar_prefetch=0,
            grid=(n_tiles,),
            in_specs=[
                pl.BlockSpec((1, d), lambda i: (0, 0)),        # sw (invariant)
                pl.BlockSpec((d, tile_n), lambda i: (0, i)),   # h^T tile (streamed)
            ],
            out_specs=pl.BlockSpec((1, tile_n), lambda i: (0, i)),  # lane-dense row
        ),
        compiler_params=pltpu.CompilerParams(
            dimension_semantics=("parallel",),
            vmem_limit_bytes=vmem_limit,
        ),
    )(sw, h_t)

    return out[0, :n]


def xavier_uniform(key, shape, dtype=jnp.float32):
    fan_in, fan_out = shape
    bound = jnp.sqrt(6.0 / (fan_in + fan_out))
    return jax.random.uniform(key, shape, dtype, minval=-bound, maxval=bound)


if __name__ == "__main__":
    hidden_dim = 32
    num_nodes = 16

    key = jax.random.PRNGKey(0)
    k_w, k_h, k_s = jax.random.split(key, 3)

    weight = xavier_uniform(k_w, (hidden_dim, hidden_dim))
    h = jax.random.normal(k_h, (num_nodes, hidden_dim), dtype=jnp.float32)
    summary = jax.random.normal(k_s, (hidden_dim,), dtype=jnp.float32)

    # Full-node path.
    scores = jax.block_until_ready(discriminator_forward(h, summary, weight))
    ref = jnp.sum(h * (summary @ weight), axis=1)
    assert scores.shape == (num_nodes,)
    assert jnp.allclose(scores, ref, atol=1e-4, rtol=1e-4)

    # Node-subset path (h[nodes]).
    nodes = jnp.array([3, 0, 7, 7, 12], dtype=jnp.int32)
    scores_sub = jax.block_until_ready(
        discriminator_forward(h, summary, weight, nodes=nodes))
    ref_sub = jnp.sum(h[nodes] * (summary @ weight), axis=1)
    assert scores_sub.shape == (nodes.shape[0],)
    assert jnp.allclose(scores_sub, ref_sub, atol=1e-4, rtol=1e-4)

    print("KERNEL_OK")
</pallas_src>

<mosaic_0001>
module attributes {stable_mosaic.version = 11 : i64} {
  func.func @_score_kernel(%arg0: i32, %arg1: memref<1x32xf32, #tpu.memory_space<vmem>>, %arg2: memref<32x128xf32, #tpu.memory_space<vmem>>, %arg3: memref<1x128xf32, #tpu.memory_space<vmem>>) attributes {dimension_semantics = [#tpu.dimension_semantics<parallel>], iteration_bounds = array<i64: 1>, scalar_prefetch = 0 : i64, scratch_operands = 0 : i64, tpu.core_type = #tpu.core_type<tc>, window_params = [{pipeline_mode = #tpu.pipeline_mode<synchronous>, transform_indices = @transform_0, window_bounds = array<i64: 1, 32>}, {transform_indices = @transform_1, window_bounds = array<i64: 32, 128>}, {transform_indices = @transform_2, window_bounds = array<i64: 1, 128>}]} {
    %c0 = arith.constant 0 : index
    %c0_0 = arith.constant 0 : index
    %0 = vector.load %arg1[%c0, %c0_0] : memref<1x32xf32, #tpu.memory_space<vmem>>, vector<1x32xf32>
    %c0_1 = arith.constant 0 : index
    %c0_2 = arith.constant 0 : index
    %1 = vector.load %arg2[%c0_1, %c0_2] : memref<32x128xf32, #tpu.memory_space<vmem>>, vector<32x128xf32>
    %cst = arith.constant dense<0.000000e+00> : vector<1x128xf32>
    %2 = tpu.matmul %0, %1, %cst {dimension_numbers = #tpu.dot_dimension_numbers<[1], [0], [0], [1], [0, 0, 1, 1], [], []>} : vector<1x32xf32>, vector<32x128xf32>, vector<1x128xf32> -> vector<1x128xf32>
    %c0_3 = arith.constant 0 : index
    %c0_4 = arith.constant 0 : index
    %3 = vector.load %arg3[%c0_3, %c0_4] : memref<1x128xf32, #tpu.memory_space<vmem>>, vector<1x128xf32>
    tpu.vector_store %arg3[%c0_3, %c0_4], %2 {strides = array<i32>} : memref<1x128xf32, #tpu.memory_space<vmem>>, vector<1x128xf32>,
    return
  }
  func.func @transform_0(%arg0: i32) -> (i32, i32) {
    %c0_i32 = arith.constant 0 : i32
    %c0_i32_0 = arith.constant 0 : i32
    %c0_i32_1 = arith.constant 0 : i32
    return %c0_i32, %c0_i32_0 : i32, i32
  }
  func.func @transform_1(%arg0: i32) -> (i32, i32) {
    %c0_i32 = arith.constant 0 : i32
    %c0_i32_0 = arith.constant 0 : i32
    return %c0_i32, %arg0 : i32, i32
  }
  func.func @transform_2(%arg0: i32) -> (i32, i32) {
    %c0_i32 = arith.constant 0 : i32
    %c0_i32_0 = arith.constant 0 : i32
    return %c0_i32, %arg0 : i32, i32
  }
}

</mosaic_0001>

<llo_original>
// kernel: tpu_custom_call.1
$region0: #{tpu_custom_call.1}
  #allocation0 [shape = 'u32[]', space=smem, size = 0x4, offset = 0x4, fixed_abs, tag = 'smem constant byte address 0x4 - core index']
  #allocation1 [shape = 'u32[144,128]{1,0:T(1,128)}', space=vmem, size = 0x12000, scoped, tag = 'internal scratch']
  %s0 = inlined_call_operand.hbm [shape: f32[1,32], index: 0, kind: input, shape index: {}]
  %s1 = inlined_call_operand.hbm [shape: f32[32,128], index: 1, kind: input, shape index: {}]
  %s2 = inlined_call_operand.hbm [shape: f32[1,128], index: 2, kind: output, shape index: {}]
  %s3 = sld [smem:[#allocation0]]
  $region26: #{tpu_custom_call.1} parent=0
    _
  %s5 = ssub.s32 1, %s3
  %s6 = scalar_select 0, %s5, %s3
  $region1: #{tpu_custom_call.1} parent=0
    #allocation2 [shape = 'u8[512]{0}', space=vmem, size = 0x400, scoped, tag = 'input window, operand 0, single buffered']
    #allocation3 [shape = 's32[1]{0}', space=sflag, size = 0x4, scoped, tag = 'scoped memory for tpu_custom_call.1']
    #allocation4 [shape = 's32[1]{0}', space=sflag, size = 0x4, scoped, tag = 'scoped memory for tpu_custom_call.1']
    #allocation5 [shape = 'u8[16384]{0}', space=vmem, size = 0x4000, scoped, tag = 'input window, operand 1, single buffered']
    #allocation6 [shape = 's32[1]{0}', space=sflag, size = 0x4, scoped, tag = 'scoped memory for tpu_custom_call.1']
    #allocation7 [shape = 'u8[512]{0}', space=vmem, size = 0x400, scoped, tag = 'output window, operand 0, single buffered']
    %7 = vsyncpa [#allocation3], 0
    %8 = vsyncpa [#allocation6], 0
    %9 = vsyncpa [#allocation4], 0
    // Predicated region
    $region2: #{tpu_custom_call.1} parent=1 // pred_check
      _
    $region3: #{tpu_custom_call.1} parent=1 // pred_check_branch
      %11 = sbr.rel (0) target = $region5
    $region4: #{tpu_custom_call.1} parent=1 // pred_region
      %s13 = ssub.s32 16, 16
      %14 = vsyncadd [#allocation3], %s13
      %s16 = sshll.u32 [#allocation2], 4
      %s17 = int_to_ptr.vmem [resolvable:$true] %s16
      %19 = dma.hbm_to_vmem [thread:$0]  %s0, 16, %s17, [#allocation3]
    $region5: #{tpu_custom_call.1} parent=1 // pred_fallthru
      _
    // Predicated region
    $region6: #{tpu_custom_call.1} parent=1 // pred_check
      _
    $region7: #{tpu_custom_call.1} parent=1 // pred_check_branch
      %21 = sbr.rel (0) target = $region9
    $region8: #{tpu_custom_call.1} parent=1 // pred_region
      %s23 = ssub.s32 512, 512
      %24 = vsyncadd [#allocation6], %s23
      %s25 = sshll.u32 [#allocation5], 4
      %s26 = int_to_ptr.vmem [resolvable:$true] %s25
      %31 = dma.hbm_to_vmem [thread:$0]  %s1, 512, %s26, [#allocation6], 128, 128, 8
    $region9: #{tpu_custom_call.1} parent=1 // pred_fallthru
      _
    // Predicated region
    $region10: #{tpu_custom_call.1} parent=1 // pred_check
      _
    $region11: #{tpu_custom_call.1} parent=1 // pred_check_branch
      %33 = sbr.rel (0) target = $region13
    $region12: #{tpu_custom_call.1} parent=1 // pred_region
      %34 = dma.done [#allocation3], 16
    $region13: #{tpu_custom_call.1} parent=1 // pred_fallthru
      _
    // Predicated region
    $region14: #{tpu_custom_call.1} parent=1 // pred_check
      _
    $region15: #{tpu_custom_call.1} parent=1 // pred_check_branch
      %36 = sbr.rel (0) target = $region17
    $region16: #{tpu_custom_call.1} parent=1 // pred_region
      %37 = dma.done [#allocation6], 512
    $region17: #{tpu_custom_call.1} parent=1 // pred_fallthru
      _
    %v38 = vld [vmem:[#allocation2] sm:$0x1]
    %v39 = vld [vmem:[#allocation5] sm:$0xff]
    %v40 = vld [vmem:[#allocation5 + $0x8] sm:$0xff]
    %v41 = vld [vmem:[#allocation5 + $0x10] sm:$0xff]
    %v42 = vld [vmem:[#allocation5 + $0x18] sm:$0xff]
    %vm43 = vcmask 261120
    %v45 = vsel %vm43, %v38, 0
    %47 = vmatprep.subr.mxu0 0.0
    %48 = vmatpush1.msra.mxu0 %v39
    %49 = vmatprep.subr.mxu0 0.0
    %50 = vmatpush1.msra.mxu0 %v40
    %51 = vmatprep.subr.mxu0 0.0
    %52 = vmatpush1.msra.mxu0 %v41
    %53 = vmatprep.subr.mxu0 0.0
    %54 = vmatpush1.msra.mxu0 %v42
    %55 = vmatprep.subr.mxu0 0.0
    %56 = vmatpush1.msra.mxu0 0.0
    %57 = vmatprep.subr.mxu0 0.0
    %58 = vmatpush1.msra.mxu0 0.0
    %59 = vmatprep.subr.mxu0 0.0
    %60 = vmatpush1.msra.mxu0 0.0
    %61 = vmatprep.subr.mxu0 0.0
    %62 = vmatpush1.msra.mxu0 0.0
    %63 = vmatprep.subr.mxu0 0.0
    %64 = vmatpush1.msra.mxu0 0.0
    %65 = vmatprep.subr.mxu0 0.0
    %66 = vmatpush1.msra.mxu0 0.0
    %67 = vmatprep.subr.mxu0 0.0
    %68 = vmatpush1.msra.mxu0 0.0
    %69 = vmatprep.subr.mxu0 0.0
    %70 = vmatpush1.msra.mxu0 0.0
    %71 = vmatprep.subr.mxu0 0.0
    %72 = vmatpush1.msra.mxu0 0.0
    %73 = vmatprep.subr.mxu0 0.0
    %74 = vmatpush1.msra.mxu0 0.0
    %75 = vmatprep.subr.mxu0 0.0
    %76 = vmatpush1.msra.mxu0 0.0
    %77 = vmatprep.subr.mxu0 0.0
    %78 = vmatpush1.msra.mxu0 0.0
    %79 = vmatprep.subr.mxu0 0.0
    %80 = vmatpush1.msra.mxu0 0.0
    %81 = vmatprep.subr.mxu0 0.0
    %82 = vmatpush1.msra.mxu0 0.0
    %83 = vmatprep.subr.mxu0 0.0
    %84 = vmatpush1.msra.mxu0 0.0
    %85 = vmatprep.subr.mxu0 0.0
    %86 = vmatpush1.msra.mxu0 0.0
    %87 = vmatprep.subr.mxu0 0.0
    %88 = vmatpush1.msra.mxu0 0.0
    %89 = vmatprep.subr.mxu0 0.0
    %90 = vmatpush1.msra.mxu0 0.0
    %91 = vmatprep.subr.mxu0 0.0
    %92 = vmatpush1.msra.mxu0 0.0
    %93 = vmatprep.subr.mxu0 0.0
    %94 = vmatpush1.msra.mxu0 0.0
    %95 = vmatprep.subr.mxu0 0.0
    %96 = vmatpush1.msra.mxu0 0.0
    %97 = vmatprep.subr.mxu0 0.0
    %98 = vmatpush1.msra.mxu0 0.0
    %99 = vmatprep.subr.mxu0 0.0
    %100 = vmatpush1.msra.mxu0 0.0
    %101 = vmatprep.subr.mxu0 0.0
    %102 = vmatpush1.msra.mxu0 0.0
    %103 = vmatprep.subr.mxu0 0.0
    %104 = vmatpush1.msra.mxu0 0.0
    %105 = vmatprep.subr.mxu0 0.0
    %106 = vmatpush1.msra.mxu0 0.0
    %107 = vmatprep.subr.mxu0 0.0
    %108 = vmatpush1.msra.mxu0 0.0
    %109 = vmatprep.subr.mxu0 0.0
    %110 = vmatpush1.msra.mxu0 0.0
    %111 = vmatprep.mubr.f32.mxu0 0.0
    %112 = vmatmul.mubr.f32.gmra.mrb[0].mxu0 %v45
    %v113 = vpop.f32.mrb[0].mxu0
    %v114 = vadd.f32 0.0, %v113
    %v115 = vpop.f32.mrb[0].mxu0
    %116 = vdwg.mxu0
    %117 = vst [vmem:[#allocation7] sm:$0x1] %v114
    // Predicated region
    $region18: #{tpu_custom_call.1} parent=1 // pred_check
      _
    $region19: #{tpu_custom_call.1} parent=1 // pred_check_branch
      %119 = sbr.rel (0) target = $region21
    $region20: #{tpu_custom_call.1} parent=1 // pred_region
      %s121 = ssub.s32 16, 16
      %122 = vsyncadd [#allocation4], %s121
      %s124 = sshll.u32 [#allocation7], 4
      %s125 = int_to_ptr.vmem [resolvable:$true] %s124
      %127 = dma.vmem_to_hbm [thread:$0]  %s125, 16, %s2, [#allocation4]
    $region21: #{tpu_custom_call.1} parent=1 // pred_fallthru
      _
    // Predicated region
    $region22: #{tpu_custom_call.1} parent=1 // pred_check
      _
    $region23: #{tpu_custom_call.1} parent=1 // pred_check_branch
      %129 = sbr.rel (0) target = $region25
    $region24: #{tpu_custom_call.1} parent=1 // pred_region
      %130 = dma.done [#allocation4], 16
    $region25: #{tpu_custom_call.1} parent=1 // pred_fallthru
      _
    %131 = vsyncpa [#allocation3], 1
    %132 = vsyncpa [#allocation6], 1
    %133 = vsyncpa [#allocation4], 1

</llo_original>
